<compile_context>
chip_gen: v5e
topology: v5e:2x2
jax: 0.10.0
libtpu: 0.0.40
codegen_flags: <defaults>
</compile_context>

<pallas_src>
import functools

import jax
import jax.numpy as jnp
from jax.experimental import pallas as pl
from jax.experimental.pallas import tpu as pltpu


# ----------------------------- small helpers --------------------------------
def _round_up(x, m):
    return (x + m - 1) // m * m


def _pad_axis(x, axis, target):
    pad = target - x.shape[axis]
    if pad == 0:
        return x
    widths = [(0, 0)] * x.ndim
    widths[axis] = (0, pad)
    return jnp.pad(x, widths)


# ------------------------------- the kernel ---------------------------------
def _convex_quadratic_kernel(x_ref, w_ref, b_ref, o_ref, *, rank):
    """One (tm, tn) output tile.

    x_ref: (tm, Kp)            bf16  activations
    w_ref: (Kp, (rank+1)*tn)   bf16  [linear | quad_0 | ... | quad_{rank-1}]
    b_ref: (1, tn)             f32   bias
    o_ref: (tm, tn)            f32   output
    """
    tn = o_ref.shape[-1]
    # Single wide MXU matmul covering the linear part and all rank components;
    # f32 accumulation.
    acc = jnp.dot(x_ref[...], w_ref[...], preferred_element_type=jnp.float32)
    out = acc[:, :tn] + b_ref[...]
    for r in range(rank):                       # static, unrolled; VPU-only epilogue
        q = acc[:, (r + 1) * tn:(r + 2) * tn]   # lane-aligned static slice
        out = out + q * q
    o_ref[...] = out.astype(o_ref.dtype)


# ------------------------------- the wrapper ---------------------------------
def convex_quadratic(x, quadratic_decomposed, weight, bias=None):
    """Pallas forward of the PyTorch ConvexQuadratic layer.

    x:                      (..., in_features) float32
    quadratic_decomposed:   (in_features, rank, out_features)
    weight:                 (out_features, in_features)
    bias:                   (out_features,) or None
    returns:                (..., out_features) float32
    """
    K = x.shape[-1]
    lead = x.shape[:-1]
    x2 = x.reshape(-1, K)
    M = x2.shape[0]
    Kq, rank, C = quadratic_decomposed.shape
    assert Kq == K and weight.shape == (C, K)

    # ----- tile selection ----------------------------------------------------
    Kp = _round_up(K, 128)                  # full K resident per block (no K grid)
    tn = 256 if C >= 512 else 128           # 256 fills the 256-wide MXU on v6e/v7x
    Cp = _round_up(C, tn)
    nj = Cp // tn
    if M <= 128:
        tm = _round_up(max(M, 16), 16)
    elif M <= 512:
        tm = 128                            # keep >=2 parallel M tiles (v7x: 2 TCs)
    else:
        tm = 256
    Mp = _round_up(M, tm)

    # ----- operand packing (bf16 MXU operands, f32 epilogue inputs) ----------
    x_p = _pad_axis(_pad_axis(x2, 0, Mp), 1, Kp).astype(jnp.bfloat16)

    lin_w = weight.T                                          # (K, C)
    quad_w = jnp.transpose(quadratic_decomposed, (1, 0, 2))   # (rank, K, C)
    comb = jnp.concatenate([lin_w[None], quad_w], axis=0)     # (rank+1, K, C)
    comb = _pad_axis(_pad_axis(comb, 1, Kp), 2, Cp)           # (rank+1, Kp, Cp)
    # Interleave per output tile so each (tm, tn) block reads one contiguous
    # (Kp, (rank+1)*tn) slab: column index = j*(rank+1)*tn + s*tn + t.
    comb = comb.reshape(rank + 1, Kp, nj, tn)
    comb = comb.transpose(1, 2, 0, 3).reshape(Kp, nj * (rank + 1) * tn)
    comb = comb.astype(jnp.bfloat16)

    b = bias if bias is not None else jnp.zeros((C,), jnp.float32)
    b_p = _pad_axis(b.astype(jnp.float32).reshape(1, C), 1, Cp)

    grid = (Mp // tm, nj)
    out = pl.pallas_call(
        functools.partial(_convex_quadratic_kernel, rank=rank),
        out_shape=jax.ShapeDtypeStruct((Mp, Cp), jnp.float32),
        grid=grid,
        in_specs=[
            pl.BlockSpec((tm, Kp), lambda i, j: (i, 0)),
            pl.BlockSpec((Kp, (rank + 1) * tn), lambda i, j: (0, j)),
            pl.BlockSpec((1, tn), lambda i, j: (0, j)),
        ],
        out_specs=pl.BlockSpec((tm, tn), lambda i, j: (i, j)),
        compiler_params=pltpu.CompilerParams(
            dimension_semantics=("parallel", "parallel")),
    )(x_p, comb, b_p)
    return out[:M, :C].reshape(*lead, C)


# ------------------------------ pure-JAX reference ---------------------------
def convex_quadratic_ref(x, quadratic_decomposed, weight, bias=None,
                         precision=None):
    # quad = (x.matmul(Q.transpose(1,0)).transpose(1,0) ** 2).sum(dim=1)
    quad = jnp.einsum('...k,kro->...ro', x, quadratic_decomposed,
                      precision=precision)
    quad = jnp.sum(quad ** 2, axis=-2)
    lin = jnp.einsum('...k,ok->...o', x, weight, precision=precision)
    if bias is not None:
        lin = lin + bias
    return quad + lin


if __name__ == "__main__":
    key = jax.random.PRNGKey(0)
    k_x, k_q, k_w, k_b = jax.random.split(key, 4)

    batch, in_features, out_features, rank = 200, 48, 192, 4
    x = jax.random.normal(k_x, (batch, in_features), jnp.float32)
    quadratic_decomposed = jax.random.normal(
        k_q, (in_features, rank, out_features), jnp.float32)
    weight = jax.random.normal(k_w, (out_features, in_features), jnp.float32)
    bias = jax.random.normal(k_b, (out_features,), jnp.float32)

    fwd = jax.jit(convex_quadratic)
    y = fwd(x, quadratic_decomposed, weight, bias)
    jax.block_until_ready(y)
    assert y.shape == (batch, out_features) and y.dtype == jnp.float32

    # Correctness check against the reference evaluated on the same bf16-
    # quantized operands the kernel feeds the MXU (epilogue is exact f32).
    q = lambda a: a.astype(jnp.bfloat16).astype(jnp.float32)
    y_ref = convex_quadratic_ref(q(x), q(quadratic_decomposed), q(weight), bias,
                                 precision=jax.lax.Precision.HIGHEST)
    err = float(jnp.max(jnp.abs(y - y_ref)))
    assert jnp.allclose(y, y_ref, rtol=1e-2, atol=1e-2), err

    print("KERNEL_OK")
</pallas_src>

<mosaic_0001>
module attributes {stable_mosaic.version = 11 : i64} {
  func.func @_convex_quadratic_kernel(%arg0: i32, %arg1: i32, %arg2: memref<128x128xbf16, #tpu.memory_space<vmem>>, %arg3: memref<128x640xbf16, #tpu.memory_space<vmem>>, %arg4: memref<1x128xf32, #tpu.memory_space<vmem>>, %arg5: memref<128x128xf32, #tpu.memory_space<vmem>>) attributes {dimension_semantics = [#tpu.dimension_semantics<parallel>, #tpu.dimension_semantics<parallel>], iteration_bounds = array<i64: 2, 2>, scalar_prefetch = 0 : i64, scratch_operands = 0 : i64, tpu.core_type = #tpu.core_type<tc>, window_params = [{transform_indices = @transform_0, window_bounds = array<i64: 128, 128>}, {transform_indices = @transform_1, window_bounds = array<i64: 128, 640>}, {transform_indices = @transform_2, window_bounds = array<i64: 1, 128>}, {transform_indices = @transform_3, window_bounds = array<i64: 128, 128>}]} {
    %c0 = arith.constant 0 : index
    %c0_0 = arith.constant 0 : index
    %0 = vector.load %arg2[%c0, %c0_0] : memref<128x128xbf16, #tpu.memory_space<vmem>>, vector<128x128xbf16>
    %c0_1 = arith.constant 0 : index
    %c0_2 = arith.constant 0 : index
    %1 = vector.load %arg3[%c0_1, %c0_2] : memref<128x640xbf16, #tpu.memory_space<vmem>>, vector<128x640xbf16>
    %cst = arith.constant dense<0.000000e+00> : vector<128x640xf32>
    %2 = tpu.matmul %0, %1, %cst {dimension_numbers = #tpu.dot_dimension_numbers<[1], [0], [0], [1], [0, 0, 1, 1], [], []>} : vector<128x128xbf16>, vector<128x640xbf16>, vector<128x640xf32> -> vector<128x640xf32>
    %3 = vector.extract_strided_slice %2 {offsets = [0, 0], sizes = [128, 128], strides = [1, 1]} : vector<128x640xf32> to vector<128x128xf32>
    %c0_3 = arith.constant 0 : index
    %c0_4 = arith.constant 0 : index
    %4 = vector.load %arg4[%c0_3, %c0_4] : memref<1x128xf32, #tpu.memory_space<vmem>>, vector<1x128xf32>
    %5 = vector.broadcast %4 : vector<1x128xf32> to vector<128x128xf32>
    %6 = arith.addf %3, %5 : vector<128x128xf32>
    %7 = vector.extract_strided_slice %2 {offsets = [0, 128], sizes = [128, 128], strides = [1, 1]} : vector<128x640xf32> to vector<128x128xf32>
    %8 = arith.mulf %7, %7 : vector<128x128xf32>
    %9 = arith.addf %6, %8 : vector<128x128xf32>
    %10 = vector.extract_strided_slice %2 {offsets = [0, 256], sizes = [128, 128], strides = [1, 1]} : vector<128x640xf32> to vector<128x128xf32>
    %11 = arith.mulf %10, %10 : vector<128x128xf32>
    %12 = arith.addf %9, %11 : vector<128x128xf32>
    %13 = vector.extract_strided_slice %2 {offsets = [0, 384], sizes = [128, 128], strides = [1, 1]} : vector<128x640xf32> to vector<128x128xf32>
    %14 = arith.mulf %13, %13 : vector<128x128xf32>
    %15 = arith.addf %12, %14 : vector<128x128xf32>
    %16 = vector.extract_strided_slice %2 {offsets = [0, 512], sizes = [128, 128], strides = [1, 1]} : vector<128x640xf32> to vector<128x128xf32>
    %17 = arith.mulf %16, %16 : vector<128x128xf32>
    %18 = arith.addf %15, %17 : vector<128x128xf32>
    %c0_5 = arith.constant 0 : index
    %c0_6 = arith.constant 0 : index
    %19 = vector.load %arg5[%c0_5, %c0_6] : memref<128x128xf32, #tpu.memory_space<vmem>>, vector<128x128xf32>
    tpu.vector_store %arg5[%c0_5, %c0_6], %18 {strides = array<i32>} : memref<128x128xf32, #tpu.memory_space<vmem>>, vector<128x128xf32>,
    return
  }
  func.func @transform_0(%arg0: i32, %arg1: i32) -> (i32, i32) {
    %c0_i32 = arith.constant 0 : i32
    %c0_i32_0 = arith.constant 0 : i32
    return %arg0, %c0_i32 : i32, i32
  }
  func.func @transform_1(%arg0: i32, %arg1: i32) -> (i32, i32) {
    %c0_i32 = arith.constant 0 : i32
    %c0_i32_0 = arith.constant 0 : i32
    return %c0_i32, %arg1 : i32, i32
  }
  func.func @transform_2(%arg0: i32, %arg1: i32) -> (i32, i32) {
    %c0_i32 = arith.constant 0 : i32
    %c0_i32_0 = arith.constant 0 : i32
    return %c0_i32, %arg1 : i32, i32
  }
  func.func @transform_3(%arg0: i32, %arg1: i32) -> (i32, i32) {
    %c0_i32 = arith.constant 0 : i32
    return %arg0, %arg1 : i32, i32
  }
}

</mosaic_0001>

<llo_original>
// kernel: convex_quadratic.1
$region0: #{convex_quadratic.1}
  #allocation0 [shape = 'u32[]', space=smem, size = 0x4, offset = 0x4, fixed_abs, tag = 'smem constant byte address 0x4 - core index']
  #allocation1 [shape = 'u32[72,128]{1,0:T(1,128)}', space=vmem, size = 0x9000, scoped, tag = 'internal scratch']
  %s0 = inlined_call_operand.vmem [shape: bf16[256,128], index: 0, kind: input, shape index: {}]
  %s1 = inlined_call_operand.vmem [shape: bf16[128,1280], index: 1, kind: input, shape index: {}]
  %s2 = inlined_call_operand.vmem [shape: f32[1,256], index: 2, kind: input, shape index: {}]
  %s3 = inlined_call_operand.vmem [shape: f32[256,256], index: 3, kind: output, shape index: {}]
  %s4 = sld [smem:[#allocation0]]
  $region105: #{convex_quadratic.1} parent=0
    _
  %s6 = ssub.s32 1, %s4
  %s7 = scalar_select 0, %s6, %s4
  $region1: #{convex_quadratic.1} parent=0
    #allocation2 [shape = 'u8[327680]{0}', space=vmem, size = 0x50000, scoped, tag = 'input window, operand 1']
    #allocation3 [shape = 'u8[131072]{0}', space=vmem, size = 0x20000, scoped, tag = 'output window, operand 0']
    loop: start=0, step=1, limit=6
    $region2: #{convex_quadratic.1} parent=1 // loop_pre_header
      _
    $region3: #{convex_quadratic.1} parent=1 // loop_header
      %s9 = sphi 0, %s13
      %p10 = scmp.ge.s32.totalorder %s9, 6
      %s16 = sphi 0, %s28
      %s17 = sphi 0, %s24
      %s18 = sphi 0, %s16
      %s19 = sphi 0, %s17
      %s20 = sphi 0, %s18
      %s21 = sphi 0, %s19
      %s31 = sphi 0, %s33
      %s34 = sphi 0, %s31
      %s35 = sphi 0, %s34
      %s51 = sphi 0, %s35
      %s57 = sphi 0, %s59
      %s60 = sphi 0, %s57
      %s61 = sphi 0, %s60
      %s77 = sphi 0, %s61
      %s83 = sphi 0, %s85
      %s86 = sphi 0, %s83
      %s87 = sphi 0, %s86
      %s103 = sphi 0, %s87
      %s111 = sphi 0, %s113
      %s114 = sphi 0, %s111
      %s115 = sphi 0, %s114
      %s131 = sphi 0, %s115
    $region4: #{convex_quadratic.1} parent=1 // loop_header_branch
      %12 = sbr.rel (%p10) target = $region8
    $region5: #{convex_quadratic.1} parent=1 // loop_body
      %s14 = ssub.s32 %s9, 1
      %s15 = ssub.s32 %s9, 2
      %s22 = sadd.s32 1, %s17
      %p23 = scmp.ge.s32.totalorder %s22, 2
      %s24 = scalar_select %p23, 0, %s22
      %s25 = sadd.s32 1, %s16
      %s26 = scalar_select %p23, %s25, %s16
      %p27 = scmp.ge.s32.totalorder %s26, 2
      %s28 = scalar_select %p27, 0, %s26
      %s29 = ssub.s32 %s16, %s28
      %p30 = scmp.eq.s32.totalorder %s29, 0
      %s32 = sadd.s32 %s31, 1
      %s33 = scalar_select %p30, %s31, %s32
      %p36 = pneg %p30
      %p37 = scmp.eq.s32.totalorder %s9, 3
      %p38 = por %p36, %p37
      %p39 = scmp.ne.s32.totalorder %s31, %s34
      %p40 = scmp.eq.s32.totalorder %s9, 0
      %p41 = por %p39, %p40
      %p42 = scmp.ne.s32.totalorder %s31, %s34
      %p43 = scmp.eq.s32.totalorder %s14, 3
      %p44 = por %p42, %p43
      %p45 = scmp.ne.s32.totalorder %s34, %s35
      %p46 = scmp.eq.s32.totalorder %s14, 0
      %p47 = por %p45, %p46
      %p48 = scmp.ne.s32.totalorder %s34, %s35
      %p49 = scmp.eq.s32.totalorder %s15, 3
      %p50 = por %p48, %p49
      %p52 = scmp.ne.s32.totalorder %s35, %s51
      %p53 = scmp.eq.s32.totalorder %s15, 0
      %p54 = por %p52, %p53
      %s55 = ssub.s32 %s17, %s24
      %p56 = scmp.eq.s32.totalorder %s55, 0
      %s58 = sadd.s32 %s57, 1
      %s59 = scalar_select %p56, %s57, %s58
      %p62 = pneg %p56
      %p63 = scmp.eq.s32.totalorder %s9, 3
      %p64 = por %p62, %p63
      %p65 = scmp.ne.s32.totalorder %s57, %s60
      %p66 = scmp.eq.s32.totalorder %s9, 0
      %p67 = por %p65, %p66
      %p68 = scmp.ne.s32.totalorder %s57, %s60
      %p69 = scmp.eq.s32.totalorder %s14, 3
      %p70 = por %p68, %p69
      %p71 = scmp.ne.s32.totalorder %s60, %s61
      %p72 = scmp.eq.s32.totalorder %s14, 0
      %p73 = por %p71, %p72
      %p74 = scmp.ne.s32.totalorder %s60, %s61
      %p75 = scmp.eq.s32.totalorder %s15, 3
      %p76 = por %p74, %p75
      %p78 = scmp.ne.s32.totalorder %s61, %s77
      %p79 = scmp.eq.s32.totalorder %s15, 0
      %p80 = por %p78, %p79
      %s81 = ssub.s32 %s17, %s24
      %p82 = scmp.eq.s32.totalorder %s81, 0
      %s84 = sadd.s32 %s83, 1
      %s85 = scalar_select %p82, %s83, %s84
      %p88 = pneg %p82
      %p89 = scmp.eq.s32.totalorder %s9, 3
      %p90 = por %p88, %p89
      %p91 = scmp.ne.s32.totalorder %s83, %s86
      %p92 = scmp.eq.s32.totalorder %s9, 0
      %p93 = por %p91, %p92
      %p94 = scmp.ne.s32.totalorder %s83, %s86
      %p95 = scmp.eq.s32.totalorder %s14, 3
      %p96 = por %p94, %p95
      %p97 = scmp.ne.s32.totalorder %s86, %s87
      %p98 = scmp.eq.s32.totalorder %s14, 0
      %p99 = por %p97, %p98
      %p100 = scmp.ne.s32.totalorder %s86, %s87
      %p101 = scmp.eq.s32.totalorder %s15, 3
      %p102 = por %p100, %p101
      %p104 = scmp.ne.s32.totalorder %s87, %s103
      %p105 = scmp.eq.s32.totalorder %s15, 0
      %p106 = por %p104, %p105
      %s107 = ssub.s32 %s16, %s28
      %s108 = ssub.s32 %s17, %s24
      %s109 = sor.u32 %s107, %s108
      %p110 = scmp.eq.s32.totalorder %s109, 0
      %s112 = sadd.s32 %s111, 1
      %s113 = scalar_select %p110, %s111, %s112
      %p116 = pneg %p110
      %p117 = scmp.eq.s32.totalorder %s9, 3
      %p118 = por %p116, %p117
      %p119 = scmp.ne.s32.totalorder %s111, %s114
      %p120 = scmp.eq.s32.totalorder %s9, 0
      %p121 = por %p119, %p120
      %p122 = scmp.ne.s32.totalorder %s111, %s114
      %p123 = scmp.eq.s32.totalorder %s14, 3
      %p124 = por %p122, %p123
      %p125 = scmp.ne.s32.totalorder %s114, %s115
      %p126 = scmp.eq.s32.totalorder %s14, 0
      %p127 = por %p125, %p126
      %p128 = scmp.ne.s32.totalorder %s114, %s115
      %p129 = scmp.eq.s32.totalorder %s15, 3
      %p130 = por %p128, %p129
      %p132 = scmp.ne.s32.totalorder %s115, %s131
      %p133 = scmp.eq.s32.totalorder %s15, 0
      %p134 = por %p132, %p133
      %p135 = scmp.le.s32.totalorder 1, %s9
      %p136 = scmp.lt.s32.totalorder %s9, 5
      %p137 = pnand %p135, %p136
      %p138 = pneg %p137
      // Predicated region
      $region9: #{convex_quadratic.1} parent=5 // pred_check
        _
      $region10: #{convex_quadratic.1} parent=5 // pred_check_branch
        %140 = sbr.rel (%p137) target = $region12
      $region11: #{convex_quadratic.1} parent=5 // pred_region
        %s141 = ssub.s32 %s9, 1
      $region12: #{convex_quadratic.1} parent=5 // pred_fallthru
        _
      %p142 = scmp.lt.s32.totalorder %s9, 4
      // Predicated region
      $region13: #{convex_quadratic.1} parent=5 // pred_check
        %p143 = pneg %p142
      $region14: #{convex_quadratic.1} parent=5 // pred_check_branch
        %145 = sbr.rel (%p143) target = $region16
      $region15: #{convex_quadratic.1} parent=5 // pred_region
        // Predicated region
        $region17: #{convex_quadratic.1} parent=15 // pred_check
          %p146 = pneg %p41
        $region18: #{convex_quadratic.1} parent=15 // pred_check_branch
          %148 = sbr.rel (%p146) target = $region20
        $region19: #{convex_quadratic.1} parent=15 // pred_region
          %s149 = smul.u32 16, %s16
          %p150 = scmp.lt.s32.totalorder %s149, 31
          %s151 = scalar_select %p150, %s149, 31
          %s152 = smul.addr %s151, 4
          %s153 = scalar_lea.vmem %s0, %s152
          %s154 = smul.u32 16, %s16
        $region20: #{convex_quadratic.1} parent=15 // pred_fallthru
          _
        // Predicated region
        $region21: #{convex_quadratic.1} parent=15 // pred_check
          %p155 = pneg %p67
        $region22: #{convex_quadratic.1} parent=15 // pred_check_branch
          %157 = sbr.rel (%p155) target = $region24
        $region23: #{convex_quadratic.1} parent=15 // pred_region
          %s158 = sand.u32 %s57, 1
          %s159 = sand.u32 %s57, 1
          %s160 = smul.addr %s159, 320
          %s161 = scalar_lea.vmem [#allocation2], %s160
          %s162 = smul.u32 5, %s17
          %s163 = smul.addr %s162, 4
          %s164 = scalar_lea.vmem %s1, %s163
          // Predicated region
          $region25: #{convex_quadratic.1} parent=23 // pred_check
            _
          $region26: #{convex_quadratic.1} parent=23 // pred_check_branch
            %166 = sbr.rel (0) target = $region28
          $region27: #{convex_quadratic.1} parent=23 // pred_region
            // Predicated region
            $region29: #{convex_quadratic.1} parent=27 // pred_check
              _
            $region30: #{convex_quadratic.1} parent=27 // pred_check_branch
              %168 = sbr.rel (0) target = $region32
            $region31: #{convex_quadratic.1} parent=27 // pred_region
              %s169 = scalar_lea.vmem %s164, 16
              %s170 = scalar_lea.vmem %s161, 16 [#allocation2]
              loop: start=0, step=1, limit=1
              $region33: #{convex_quadratic.1} parent=31 // loop_pre_header
                _
              $region34: #{convex_quadratic.1} parent=31 // loop_header
                %s172 = sphi 0, %s176
                %p173 = scmp.ge.s32.totalorder %s172, 1
                %s177 = sphi %s164, %s164
                %s178 = sphi %s161, %s161
              $region35: #{convex_quadratic.1} parent=31 // loop_header_branch
                %175 = sbr.rel (%p173) target = $region39
              $region36: #{convex_quadratic.1} parent=31 // loop_body
                %v179 = vld [vmem:[%s177] sm:$0xff]
                %180 = vst [vmem:[%s178] sm:$0xff] %v179
                %v181 = vld [vmem:[%s177 + $0x8] sm:$0xff]
                %182 = vst [vmem:[%s178 + $0x8] sm:$0xff] %v181
                %v183 = vld [vmem:[%s177 + $0x28] sm:$0xff]
                %184 = vst [vmem:[%s178 + $0x14] sm:$0xff] %v183
                %v185 = vld [vmem:[%s177 + $0x30] sm:$0xff]
                %186 = vst [vmem:[%s178 + $0x1c] sm:$0xff] %v185
                %v187 = vld [vmem:[%s177 + $0x50] sm:$0xff]
                %188 = vst [vmem:[%s178 + $0x28] sm:$0xff] %v187
                %v189 = vld [vmem:[%s177 + $0x58] sm:$0xff]
                %190 = vst [vmem:[%s178 + $0x30] sm:$0xff] %v189
                %v191 = vld [vmem:[%s177 + $0x78] sm:$0xff]
                %192 = vst [vmem:[%s178 + $0x3c] sm:$0xff] %v191
                %v193 = vld [vmem:[%s177 + $0x80] sm:$0xff]
                %194 = vst [vmem:[%s178 + $0x44] sm:$0xff] %v193
                %v195 = vld [vmem:[%s177 + $0xa0] sm:$0xff]
                %196 = vst [vmem:[%s178 + $0x50] sm:$0xff] %v195
                %v197 = vld [vmem:[%s177 + $0xa8] sm:$0xff]
                %198 = vst [vmem:[%s178 + $0x58] sm:$0xff] %v197
                %v199 = vld [vmem:[%s177 + $0xc8] sm:$0xff]
                %200 = vst [vmem:[%s178 + $0x64] sm:$0xff] %v199
                %v201 = vld [vmem:[%s177 + $0xd0] sm:$0xff]
                %202 = vst [vmem:[%s178 + $0x6c] sm:$0xff] %v201
                %v203 = vld [vmem:[%s177 + $0xf0] sm:$0xff]
                %204 = vst [vmem:[%s178 + $0x78] sm:$0xff] %v203
                %v205 = vld [vmem:[%s177 + $0xf8] sm:$0xff]
                %206 = vst [vmem:[%s178 + $0x80] sm:$0xff] %v205
                %v207 = vld [vmem:[%s177 + $0x118] sm:$0xff]
                %208 = vst [vmem:[%s178 + $0x8c] sm:$0xff] %v207
                %v209 = vld [vmem:[%s177 + $0x120] sm:$0xff]
                %210 = vst [vmem:[%s178 + $0x94] sm:$0xff] %v209
                %v211 = vld [vmem:[%s177 + $0x140] sm:$0xff]
                %212 = vst [vmem:[%s178 + $0xa0] sm:$0xff] %v211
                %v213 = vld [vmem:[%s177 + $0x148] sm:$0xff]
                %214 = vst [vmem:[%s178 + $0xa8] sm:$0xff] %v213
                %v215 = vld [vmem:[%s177 + $0x168] sm:$0xff]
                %216 = vst [vmem:[%s178 + $0xb4] sm:$0xff] %v215
                %v217 = vld [vmem:[%s177 + $0x170] sm:$0xff]
                %218 = vst [vmem:[%s178 + $0xbc] sm:$0xff] %v217
                %v219 = vld [vmem:[%s177 + $0x190] sm:$0xff]
                %220 = vst [vmem:[%s178 + $0xc8] sm:$0xff] %v219
                %v221 = vld [vmem:[%s177 + $0x198] sm:$0xff]
                %222 = vst [vmem:[%s178 + $0xd0] sm:$0xff] %v221
                %v223 = vld [vmem:[%s177 + $0x1b8] sm:$0xff]
                %224 = vst [vmem:[%s178 + $0xdc] sm:$0xff] %v223
                %v225 = vld [vmem:[%s177 + $0x1c0] sm:$0xff]
                %226 = vst [vmem:[%s178 + $0xe4] sm:$0xff] %v225
                %v227 = vld [vmem:[%s177 + $0x1e0] sm:$0xff]
                %228 = vst [vmem:[%s178 + $0xf0] sm:$0xff] %v227
                %v229 = vld [vmem:[%s177 + $0x1e8] sm:$0xff]
                %230 = vst [vmem:[%s178 + $0xf8] sm:$0xff] %v229
                %v231 = vld [vmem:[%s177 + $0x208] sm:$0xff]
                %232 = vst [vmem:[%s178 + $0x104] sm:$0xff] %v231
                %v233 = vld [vmem:[%s177 + $0x210] sm:$0xff]
                %234 = vst [vmem:[%s178 + $0x10c] sm:$0xff] %v233
                %v235 = vld [vmem:[%s177 + $0x230] sm:$0xff]
                %236 = vst [vmem:[%s178 + $0x118] sm:$0xff] %v235
                %v237 = vld [vmem:[%s177 + $0x238] sm:$0xff]
                %238 = vst [vmem:[%s178 + $0x120] sm:$0xff] %v237
                %v239 = vld [vmem:[%s177 + $0x258] sm:$0xff]
                %240 = vst [vmem:[%s178 + $0x12c] sm:$0xff] %v239
                %v241 = vld [vmem:[%s177 + $0x260] sm:$0xff]
                %242 = vst [vmem:[%s178 + $0x134] sm:$0xff] %v241
              $region37: #{convex_quadratic.1} parent=31 // loop_footer
                %s176 = sadd.s32 1, %s172
              $region38: #{convex_quadratic.1} parent=31 // loop_footer_branch
                %171 = sbr.rel target = $region34
              $region39: #{convex_quadratic.1} parent=31 // loop_exit
                _
              %s244 = ssub.s32 16, 1
              loop: start=0, step=1, limit=1
              $region40: #{convex_quadratic.1} parent=31 // loop_pre_header
                _
              $region41: #{convex_quadratic.1} parent=31 // loop_header
                %s246 = sphi 0, %s250
                %p247 = scmp.ge.s32.totalorder %s246, 1
                %s251 = sphi %s169, %s169
                %s252 = sphi %s170, %s170
              $region42: #{convex_quadratic.1} parent=31 // loop_header_branch
                %249 = sbr.rel (%p247) target = $region46
              $region43: #{convex_quadratic.1} parent=31 // loop_body
                %v253 = vld [vmem:[%s251] sm:%s244]
                %254 = vst [vmem:[%s252] sm:%s244] %v253
                %v255 = vld [vmem:[%s251 + $0x28] sm:%s244]
                %256 = vst [vmem:[%s252 + $0x14] sm:%s244] %v255
                %v257 = vld [vmem:[%s251 + $0x50] sm:%s244]
                %258 = vst [vmem:[%s252 + $0x28] sm:%s244] %v257
                %v259 = vld [vmem:[%s251 + $0x78] sm:%s244]
                %260 = vst [vmem:[%s252 + $0x3c] sm:%s244] %v259
                %v261 = vld [vmem:[%s251 + $0xa0] sm:%s244]
                %262 = vst [vmem:[%s252 + $0x50] sm:%s244] %v261
                %v263 = vld [vmem:[%s251 + $0xc8] sm:%s244]
                %264 = vst [vmem:[%s252 + $0x64] sm:%s244] %v263
                %v265 = vld [vmem:[%s251 + $0xf0] sm:%s244]
                %266 = vst [vmem:[%s252 + $0x78] sm:%s244] %v265
                %v267 = vld [vmem:[%s251 + $0x118] sm:%s244]
                %268 = vst [vmem:[%s252 + $0x8c] sm:%s244] %v267
                %v269 = vld [vmem:[%s251 + $0x140] sm:%s244]
                %270 = vst [vmem:[%s252 + $0xa0] sm:%s244] %v269
                %v271 = vld [vmem:[%s251 + $0x168] sm:%s244]
                %272 = vst [vmem:[%s252 + $0xb4] sm:%s244] %v271
                %v273 = vld [vmem:[%s251 + $0x190] sm:%s244]
                %274 = vst [vmem:[%s252 + $0xc8] sm:%s244] %v273
                %v275 = vld [vmem:[%s251 + $0x1b8] sm:%s244]
                %276 = vst [vmem:[%s252 + $0xdc] sm:%s244] %v275
                %v277 = vld [vmem:[%s251 + $0x1e0] sm:%s244]
                %278 = vst [vmem:[%s252 + $0xf0] sm:%s244] %v277
                %v279 = vld [vmem:[%s251 + $0x208] sm:%s244]
                %280 = vst [vmem:[%s252 + $0x104] sm:%s244] %v279
                %v281 = vld [vmem:[%s251 + $0x230] sm:%s244]
                %282 = vst [vmem:[%s252 + $0x118] sm:%s244] %v281
                %v283 = vld [vmem:[%s251 + $0x258] sm:%s244]
                %284 = vst [vmem:[%s252 + $0x12c] sm:%s244] %v283
              $region44: #{convex_quadratic.1} parent=31 // loop_footer
                %s250 = sadd.s32 1, %s246
              $region45: #{convex_quadratic.1} parent=31 // loop_footer_branch
                %245 = sbr.rel target = $region41
              $region46: #{convex_quadratic.1} parent=31 // loop_exit
                _
            $region32: #{convex_quadratic.1} parent=27 // pred_fallthru
              _
          $region28: #{convex_quadratic.1} parent=23 // pred_fallthru
            _
          %285 = vnop
        $region24: #{convex_quadratic.1} parent=15 // pred_fallthru
          _
        // Predicated region
        $region47: #{convex_quadratic.1} parent=15 // pred_check
          %p286 = pneg %p93
        $region48: #{convex_quadratic.1} parent=15 // pred_check_branch
          %288 = sbr.rel (%p286) target = $region50
        $region49: #{convex_quadratic.1} parent=15 // pred_region
          %p289 = scmp.lt.s32.totalorder %s17, 1
          %s290 = scalar_select %p289, %s17, 1
          %s291 = scalar_lea.vmem %s2, %s290
        $region50: #{convex_quadratic.1} parent=15 // pred_fallthru
          _
      $region16: #{convex_quadratic.1} parent=5 // pred_fallthru
        _
      %p292 = scmp.le.s32.totalorder 1, %s9
      %p293 = scmp.lt.s32.totalorder %s9, 5
      %p294 = pnand %p292, %p293
      %p295 = pneg %p294
      // Predicated region
      $region51: #{convex_quadratic.1} parent=5 // pred_check
        _
      $region52: #{convex_quadratic.1} parent=5 // pred_check_branch
        %297 = sbr.rel (%p294) target = $region54
      $region53: #{convex_quadratic.1} parent=5 // pred_region
        %s298 = ssub.s32 %s9, 1
        %s299 = sand.u32 %s60, 1
        %s300 = sand.u32 %s60, 1
        %s301 = smul.addr %s300, 320
        %s302 = scalar_lea.vmem [#allocation2], %s301
        // Predicated region
        $region55: #{convex_quadratic.1} parent=53 // pred_check
          %p303 = pneg %p73
        $region56: #{convex_quadratic.1} parent=53 // pred_check_branch
          %305 = sbr.rel (%p303) target = $region58
        $region57: #{convex_quadratic.1} parent=53 // pred_region
          _
        $region58: #{convex_quadratic.1} parent=53 // pred_fallthru
          _
        %s306 = smul.u32 16, %s18
        %p307 = scmp.lt.s32.totalorder %s306, 31
        %s308 = scalar_select %p307, %s306, 31
        %s309 = smul.addr %s308, 4
        %s310 = scalar_lea.vmem %s0, %s309
        %p311 = pneg %p47
        %p312 = pneg %p44
        %s313 = sand.u32 %s60, 1
        %s314 = sand.u32 %s60, 1
        %s315 = smul.addr %s314, 320
        %s316 = scalar_lea.vmem [#allocation2], %s315
        %p317 = pneg %p73
        %p318 = pneg %p70
        %p319 = scmp.lt.s32.totalorder %s19, 1
        %s320 = scalar_select %p319, %s19, 1
        %s321 = scalar_lea.vmem %s2, %s320
        %p322 = pneg %p99
        %p323 = pneg %p96
        %p324 = pneg %p127
        %p325 = pneg %p124
        %s326 = sand.u32 %s114, 1
        %s327 = sand.u32 %s114, 1
        %s328 = smul.addr %s327, 128
        %s329 = scalar_lea.vmem [#allocation3], %s328
        %s330 = smul.u32 16, %s18
        %p331 = scmp.lt.s32.totalorder %s330, 31
        %s332 = scalar_select %p331, %s330, 31
        %s333 = smul.addr %s332, 4
        %s334 = scalar_lea.vmem %s0, %s333
        %s335 = smul.u32 16, %s18
        %s336 = smul.u32 5, %s19
        %p337 = scmp.lt.s32.totalorder %s19, 1
        %s338 = scalar_select %p337, %s19, 1
        %s339 = scalar_lea.vmem %s2, %s338
        %s340 = smul.u32 16, %s18
        %v341 = vld [vmem:[%s334] sm:$0xf]
        %v342 = vld [vmem:[%s334 + $0x4] sm:$0xf]
        %v343 = vld [vmem:[%s334 + $0x8] sm:$0xf]
        %v344 = vld [vmem:[%s334 + $0xc] sm:$0xf]
        %v345 = vld [vmem:[%s334 + $0x10] sm:$0xf]
        %v346 = vld [vmem:[%s334 + $0x14] sm:$0xf]
        %v347 = vld [vmem:[%s334 + $0x18] sm:$0xf]
        %v348 = vld [vmem:[%s334 + $0x1c] sm:$0xf]
        %v349 = vld [vmem:[%s334 + $0x20] sm:$0xf]
        %v350 = vld [vmem:[%s334 + $0x24] sm:$0xf]
        %v351 = vld [vmem:[%s334 + $0x28] sm:$0xf]
        %v352 = vld [vmem:[%s334 + $0x2c] sm:$0xf]
        %v353 = vld [vmem:[%s334 + $0x30] sm:$0xf]
        %v354 = vld [vmem:[%s334 + $0x34] sm:$0xf]
        %v355 = vld [vmem:[%s334 + $0x38] sm:$0xf]
        %v356 = vld [vmem:[%s334 + $0x3c] sm:$0xf]
        %v357 = vld [vmem:[%s302] sm:$0xff]
        %v358 = vld [vmem:[%s302 + $0x8] sm:$0xff]
        %v359 = vld [vmem:[%s302 + $0x10] sm:$0xf]
        %v360 = vld [vmem:[%s302 + $0x14] sm:$0xff]
        %v361 = vld [vmem:[%s302 + $0x1c] sm:$0xff]
        %v362 = vld [vmem:[%s302 + $0x24] sm:$0xf]
        %v363 = vld [vmem:[%s302 + $0x28] sm:$0xff]
        %v364 = vld [vmem:[%s302 + $0x30] sm:$0xff]
        %v365 = vld [vmem:[%s302 + $0x38] sm:$0xf]
        %v366 = vld [vmem:[%s302 + $0x3c] sm:$0xff]
        %v367 = vld [vmem:[%s302 + $0x44] sm:$0xff]
        %v368 = vld [vmem:[%s302 + $0x4c] sm:$0xf]
        %v369 = vld [vmem:[%s302 + $0x50] sm:$0xff]
        %v370 = vld [vmem:[%s302 + $0x58] sm:$0xff]
        %v371 = vld [vmem:[%s302 + $0x60] sm:$0xf]
        %v372 = vld [vmem:[%s302 + $0x64] sm:$0xff]
        %v373 = vld [vmem:[%s302 + $0x6c] sm:$0xff]
        %v374 = vld [vmem:[%s302 + $0x74] sm:$0xf]
        %v375 = vld [vmem:[%s302 + $0x78] sm:$0xff]
        %v376 = vld [vmem:[%s302 + $0x80] sm:$0xff]
        %v377 = vld [vmem:[%s302 + $0x88] sm:$0xf]
        %v378 = vld [vmem:[%s302 + $0x8c] sm:$0xff]
        %v379 = vld [vmem:[%s302 + $0x94] sm:$0xff]
        %v380 = vld [vmem:[%s302 + $0x9c] sm:$0xf]
        %v381 = vld [vmem:[%s302 + $0xa0] sm:$0xff]
        %v382 = vld [vmem:[%s302 + $0xa8] sm:$0xff]
        %v383 = vld [vmem:[%s302 + $0xb0] sm:$0xf]
        %v384 = vld [vmem:[%s302 + $0xb4] sm:$0xff]
        %v385 = vld [vmem:[%s302 + $0xbc] sm:$0xff]
        %v386 = vld [vmem:[%s302 + $0xc4] sm:$0xf]
        %v387 = vld [vmem:[%s302 + $0xc8] sm:$0xff]
        %v388 = vld [vmem:[%s302 + $0xd0] sm:$0xff]
        %v389 = vld [vmem:[%s302 + $0xd8] sm:$0xf]
        %v390 = vld [vmem:[%s302 + $0xdc] sm:$0xff]
        %v391 = vld [vmem:[%s302 + $0xe4] sm:$0xff]
        %v392 = vld [vmem:[%s302 + $0xec] sm:$0xf]
        %v393 = vld [vmem:[%s302 + $0xf0] sm:$0xff]
        %v394 = vld [vmem:[%s302 + $0xf8] sm:$0xff]
        %v395 = vld [vmem:[%s302 + $0x100] sm:$0xf]
        %v396 = vld [vmem:[%s302 + $0x104] sm:$0xff]
        %v397 = vld [vmem:[%s302 + $0x10c] sm:$0xff]
        %v398 = vld [vmem:[%s302 + $0x114] sm:$0xf]
        %v399 = vld [vmem:[%s302 + $0x118] sm:$0xff]
        %v400 = vld [vmem:[%s302 + $0x120] sm:$0xff]
        %v401 = vld [vmem:[%s302 + $0x128] sm:$0xf]
        %v402 = vld [vmem:[%s302 + $0x12c] sm:$0xff]
        %v403 = vld [vmem:[%s302 + $0x134] sm:$0xff]
        %v404 = vld [vmem:[%s302 + $0x13c] sm:$0xf]
        %v421 = vunpack.c.l.b16 %v341
        %v422 = vunpack.c.l.b16 %v342
        %v423 = vunpack.c.l.b16 %v343
        %v424 = vunpack.c.l.b16 %v344
        %v425 = vunpack.c.l.b16 %v345
        %v426 = vunpack.c.l.b16 %v346
        %v427 = vunpack.c.l.b16 %v347
        %v428 = vunpack.c.l.b16 %v348
        %v429 = vunpack.c.l.b16 %v349
        %v430 = vunpack.c.l.b16 %v350
        %v431 = vunpack.c.l.b16 %v351
        %v432 = vunpack.c.l.b16 %v352
        %v433 = vunpack.c.l.b16 %v353
        %v434 = vunpack.c.l.b16 %v354
        %v435 = vunpack.c.l.b16 %v355
        %v436 = vunpack.c.l.b16 %v356
        %v437 = vpack.c.b16 %v422, %v421
        %v438 = vpack.c.b16 %v424, %v423
        %v439 = vpack.c.b16 %v426, %v425
        %v440 = vpack.c.b16 %v428, %v427
        %v441 = vpack.c.b16 %v430, %v429
        %v442 = vpack.c.b16 %v432, %v431
        %v443 = vpack.c.b16 %v434, %v433
        %v444 = vpack.c.b16 %v436, %v435
        %v501 = vunpack.c.l.b16 %v357
        %v502 = vunpack.c.h.b16 %v357
        %v503 = vunpack.c.l.b16 %v358
        %v504 = vunpack.c.h.b16 %v358
        %v505 = vunpack.c.l.b16 %v359
        %v506 = vunpack.c.l.b16 %v360
        %v507 = vunpack.c.h.b16 %v360
        %v508 = vunpack.c.l.b16 %v361
        %v509 = vunpack.c.h.b16 %v361
        %v510 = vunpack.c.l.b16 %v362
        %v511 = vunpack.c.l.b16 %v363
        %v512 = vunpack.c.h.b16 %v363
        %v513 = vunpack.c.l.b16 %v364
        %v514 = vunpack.c.h.b16 %v364
        %v515 = vunpack.c.l.b16 %v365
        %v516 = vunpack.c.l.b16 %v366
        %v517 = vunpack.c.h.b16 %v366
        %v518 = vunpack.c.l.b16 %v367
        %v519 = vunpack.c.h.b16 %v367
        %v520 = vunpack.c.l.b16 %v368
        %v521 = vunpack.c.l.b16 %v369
        %v522 = vunpack.c.h.b16 %v369
        %v523 = vunpack.c.l.b16 %v370
        %v524 = vunpack.c.h.b16 %v370
        %v525 = vunpack.c.l.b16 %v371
        %v526 = vunpack.c.l.b16 %v372
        %v527 = vunpack.c.h.b16 %v372
        %v528 = vunpack.c.l.b16 %v373
        %v529 = vunpack.c.h.b16 %v373
        %v530 = vunpack.c.l.b16 %v374
        %v531 = vunpack.c.l.b16 %v375
        %v532 = vunpack.c.h.b16 %v375
        %v533 = vunpack.c.l.b16 %v376
        %v534 = vunpack.c.h.b16 %v376
        %v535 = vunpack.c.l.b16 %v377
        %v536 = vunpack.c.l.b16 %v378
        %v537 = vunpack.c.h.b16 %v378
        %v538 = vunpack.c.l.b16 %v379
        %v539 = vunpack.c.h.b16 %v379
        %v540 = vunpack.c.l.b16 %v380
        %v541 = vunpack.c.l.b16 %v381
        %v542 = vunpack.c.h.b16 %v381
        %v543 = vunpack.c.l.b16 %v382
        %v544 = vunpack.c.h.b16 %v382
        %v545 = vunpack.c.l.b16 %v383
        %v546 = vunpack.c.l.b16 %v384
        %v547 = vunpack.c.h.b16 %v384
        %v548 = vunpack.c.l.b16 %v385
        %v549 = vunpack.c.h.b16 %v385
        %v550 = vunpack.c.l.b16 %v386
        %v551 = vunpack.c.l.b16 %v387
        %v552 = vunpack.c.h.b16 %v387
        %v553 = vunpack.c.l.b16 %v388
        %v554 = vunpack.c.h.b16 %v388
        %v555 = vunpack.c.l.b16 %v389
        %v556 = vunpack.c.l.b16 %v390
        %v557 = vunpack.c.h.b16 %v390
        %v558 = vunpack.c.l.b16 %v391
        %v559 = vunpack.c.h.b16 %v391
        %v560 = vunpack.c.l.b16 %v392
        %v561 = vunpack.c.l.b16 %v393
        %v562 = vunpack.c.h.b16 %v393
        %v563 = vunpack.c.l.b16 %v394
        %v564 = vunpack.c.h.b16 %v394
        %v565 = vunpack.c.l.b16 %v395
        %v566 = vunpack.c.l.b16 %v396
        %v567 = vunpack.c.h.b16 %v396
        %v568 = vunpack.c.l.b16 %v397
        %v569 = vunpack.c.h.b16 %v397
        %v570 = vunpack.c.l.b16 %v398
        %v571 = vunpack.c.l.b16 %v399
        %v572 = vunpack.c.h.b16 %v399
        %v573 = vunpack.c.l.b16 %v400
        %v574 = vunpack.c.h.b16 %v400
        %v575 = vunpack.c.l.b16 %v401
        %v576 = vunpack.c.l.b16 %v402
        %v577 = vunpack.c.h.b16 %v402
        %v578 = vunpack.c.l.b16 %v403
        %v579 = vunpack.c.h.b16 %v403
        %v580 = vunpack.c.l.b16 %v404
        %v581 = vpack.c.b16 %v506, %v501
        %v582 = vpack.c.b16 %v507, %v502
        %v583 = vpack.c.b16 %v508, %v503
        %v584 = vpack.c.b16 %v509, %v504
        %v585 = vpack.c.b16 %v510, %v505
        %v586 = vpack.c.b16 %v516, %v511
        %v587 = vpack.c.b16 %v517, %v512
        %v588 = vpack.c.b16 %v518, %v513
        %v589 = vpack.c.b16 %v519, %v514
        %v590 = vpack.c.b16 %v520, %v515
        %v591 = vpack.c.b16 %v526, %v521
        %v592 = vpack.c.b16 %v527, %v522
        %v593 = vpack.c.b16 %v528, %v523
        %v594 = vpack.c.b16 %v529, %v524
        %v595 = vpack.c.b16 %v530, %v525
        %v596 = vpack.c.b16 %v536, %v531
        %v597 = vpack.c.b16 %v537, %v532
        %v598 = vpack.c.b16 %v538, %v533
        %v599 = vpack.c.b16 %v539, %v534
        %v600 = vpack.c.b16 %v540, %v535
        %v601 = vpack.c.b16 %v546, %v541
        %v602 = vpack.c.b16 %v547, %v542
        %v603 = vpack.c.b16 %v548, %v543
        %v604 = vpack.c.b16 %v549, %v544
        %v605 = vpack.c.b16 %v550, %v545
        %v606 = vpack.c.b16 %v556, %v551
        %v607 = vpack.c.b16 %v557, %v552
        %v608 = vpack.c.b16 %v558, %v553
        %v609 = vpack.c.b16 %v559, %v554
        %v610 = vpack.c.b16 %v560, %v555
        %v611 = vpack.c.b16 %v566, %v561
        %v612 = vpack.c.b16 %v567, %v562
        %v613 = vpack.c.b16 %v568, %v563
        %v614 = vpack.c.b16 %v569, %v564
        %v615 = vpack.c.b16 %v570, %v565
        %v616 = vpack.c.b16 %v576, %v571
        %v617 = vpack.c.b16 %v577, %v572
        %v618 = vpack.c.b16 %v578, %v573
        %v619 = vpack.c.b16 %v579, %v574
        %v620 = vpack.c.b16 %v580, %v575
        %661 = vmatpush.bf16.msra.mxu0 %v616
        %662 = vmatpush.bf16.msra.mxu0 %v611
        %663 = vmatpush.bf16.msra.mxu0 %v606
        %664 = vmatpush.bf16.msra.mxu0 %v601
        %665 = vmatpush.bf16.msra.mxu0 %v596
        %666 = vmatpush.bf16.msra.mxu0 %v591
        %667 = vmatpush.bf16.msra.mxu0 %v586
        %668 = vmatpush.bf16.msra.mxu0 %v581
        %669 = vmatmul.bf16.gmra.mxu0 %v437
        %v670 = vpop.f32.mrf.mxu0
        %v671 = vadd.f32 0.0, %v670
        %v672 = vpop.f32.mrf.mxu0
        %v673 = vadd.f32 0.0, %v672
        %674 = vmatmul.bf16.gmra.mxu0 %v438
        %v675 = vpop.f32.mrf.mxu0
        %v676 = vadd.f32 0.0, %v675
        %v677 = vpop.f32.mrf.mxu0
        %v678 = vadd.f32 0.0, %v677
        %679 = vmatmul.bf16.gmra.mxu0 %v439
        %v680 = vpop.f32.mrf.mxu0
        %v681 = vadd.f32 0.0, %v680
        %v682 = vpop.f32.mrf.mxu0
        %v683 = vadd.f32 0.0, %v682
        %684 = vmatmul.bf16.gmra.mxu0 %v440
        %v685 = vpop.f32.mrf.mxu0
        %v686 = vadd.f32 0.0, %v685
        %v687 = vpop.f32.mrf.mxu0
        %v688 = vadd.f32 0.0, %v687
        %689 = vmatmul.bf16.gmra.mxu0 %v441
        %v690 = vpop.f32.mrf.mxu0
        %v691 = vadd.f32 0.0, %v690
        %v692 = vpop.f32.mrf.mxu0
        %v693 = vadd.f32 0.0, %v692
        %694 = vmatmul.bf16.gmra.mxu0 %v442
        %v695 = vpop.f32.mrf.mxu0
        %v696 = vadd.f32 0.0, %v695
        %v697 = vpop.f32.mrf.mxu0
        %v698 = vadd.f32 0.0, %v697
        %699 = vmatmul.bf16.gmra.mxu0 %v443
        %v700 = vpop.f32.mrf.mxu0
        %v701 = vadd.f32 0.0, %v700
        %v702 = vpop.f32.mrf.mxu0
        %v703 = vadd.f32 0.0, %v702
        %704 = vmatmul.bf16.gmra.mxu0 %v444
        %v705 = vpop.f32.mrf.mxu0
        %v706 = vadd.f32 0.0, %v705
        %v707 = vpop.f32.mrf.mxu0
        %v708 = vadd.f32 0.0, %v707
        %709 = vdwg.mxu0
        %710 = vmatpush.bf16.msra.mxu0 %v617
        %711 = vmatpush.bf16.msra.mxu0 %v612
        %712 = vmatpush.bf16.msra.mxu0 %v607
        %713 = vmatpush.bf16.msra.mxu0 %v602
        %714 = vmatpush.bf16.msra.mxu0 %v597
        %715 = vmatpush.bf16.msra.mxu0 %v592
        %716 = vmatpush.bf16.msra.mxu0 %v587
        %717 = vmatpush.bf16.msra.mxu0 %v582
        %718 = vmatmul.bf16.gmra.mxu0 %v437
        %v719 = vpop.f32.mrf.mxu0
        %v720 = vadd.f32 0.0, %v719
        %v721 = vpop.f32.mrf.mxu0
        %v722 = vadd.f32 0.0, %v721
        %723 = vmatmul.bf16.gmra.mxu0 %v438
        %v724 = vpop.f32.mrf.mxu0
        %v725 = vadd.f32 0.0, %v724
        %v726 = vpop.f32.mrf.mxu0
        %v727 = vadd.f32 0.0, %v726
        %728 = vmatmul.bf16.gmra.mxu0 %v439
        %v729 = vpop.f32.mrf.mxu0
        %v730 = vadd.f32 0.0, %v729
        %v731 = vpop.f32.mrf.mxu0
        %v732 = vadd.f32 0.0, %v731
        %733 = vmatmul.bf16.gmra.mxu0 %v440
        %v734 = vpop.f32.mrf.mxu0
        %v735 = vadd.f32 0.0, %v734
        %v736 = vpop.f32.mrf.mxu0
        %v737 = vadd.f32 0.0, %v736
        %738 = vmatmul.bf16.gmra.mxu0 %v441
        %v739 = vpop.f32.mrf.mxu0
        %v740 = vadd.f32 0.0, %v739
        %v741 = vpop.f32.mrf.mxu0
        %v742 = vadd.f32 0.0, %v741
        %743 = vmatmul.bf16.gmra.mxu0 %v442
        %v744 = vpop.f32.mrf.mxu0
        %v745 = vadd.f32 0.0, %v744
        %v746 = vpop.f32.mrf.mxu0
        %v747 = vadd.f32 0.0, %v746
        %748 = vmatmul.bf16.gmra.mxu0 %v443
        %v749 = vpop.f32.mrf.mxu0
        %v750 = vadd.f32 0.0, %v749
        %v751 = vpop.f32.mrf.mxu0
        %v752 = vadd.f32 0.0, %v751
        %753 = vmatmul.bf16.gmra.mxu0 %v444
        %v754 = vpop.f32.mrf.mxu0
        %v755 = vadd.f32 0.0, %v754
        %v756 = vpop.f32.mrf.mxu0
        %v757 = vadd.f32 0.0, %v756
        %758 = vdwg.mxu0
        %759 = vmatpush.bf16.msra.mxu0 %v618
        %760 = vmatpush.bf16.msra.mxu0 %v613
        %761 = vmatpush.bf16.msra.mxu0 %v608
        %762 = vmatpush.bf16.msra.mxu0 %v603
        %763 = vmatpush.bf16.msra.mxu0 %v598
        %764 = vmatpush.bf16.msra.mxu0 %v593
        %765 = vmatpush.bf16.msra.mxu0 %v588
        %766 = vmatpush.bf16.msra.mxu0 %v583
        %767 = vmatmul.bf16.gmra.mxu0 %v437
        %v768 = vpop.f32.mrf.mxu0
        %v769 = vadd.f32 0.0, %v768
        %v770 = vpop.f32.mrf.mxu0
        %v771 = vadd.f32 0.0, %v770
        %772 = vmatmul.bf16.gmra.mxu0 %v438
        %v773 = vpop.f32.mrf.mxu0
        %v774 = vadd.f32 0.0, %v773
        %v775 = vpop.f32.mrf.mxu0
        %v776 = vadd.f32 0.0, %v775
        %777 = vmatmul.bf16.gmra.mxu0 %v439
        %v778 = vpop.f32.mrf.mxu0
        %v779 = vadd.f32 0.0, %v778
        %v780 = vpop.f32.mrf.mxu0
        %v781 = vadd.f32 0.0, %v780
        %782 = vmatmul.bf16.gmra.mxu0 %v440
        %v783 = vpop.f32.mrf.mxu0
        %v784 = vadd.f32 0.0, %v783
        %v785 = vpop.f32.mrf.mxu0
        %v786 = vadd.f32 0.0, %v785
        %787 = vmatmul.bf16.gmra.mxu0 %v441
        %v788 = vpop.f32.mrf.mxu0
        %v789 = vadd.f32 0.0, %v788
        %v790 = vpop.f32.mrf.mxu0
        %v791 = vadd.f32 0.0, %v790
        %792 = vmatmul.bf16.gmra.mxu0 %v442
        %v793 = vpop.f32.mrf.mxu0
        %v794 = vadd.f32 0.0, %v793
        %v795 = vpop.f32.mrf.mxu0
        %v796 = vadd.f32 0.0, %v795
        %797 = vmatmul.bf16.gmra.mxu0 %v443
        %v798 = vpop.f32.mrf.mxu0
        %v799 = vadd.f32 0.0, %v798
        %v800 = vpop.f32.mrf.mxu0
        %v801 = vadd.f32 0.0, %v800
        %802 = vmatmul.bf16.gmra.mxu0 %v444
        %v803 = vpop.f32.mrf.mxu0
        %v804 = vadd.f32 0.0, %v803
        %v805 = vpop.f32.mrf.mxu0
        %v806 = vadd.f32 0.0, %v805
        %807 = vdwg.mxu0
        %808 = vmatpush.bf16.msra.mxu0 %v619
        %809 = vmatpush.bf16.msra.mxu0 %v614
        %810 = vmatpush.bf16.msra.mxu0 %v609
        %811 = vmatpush.bf16.msra.mxu0 %v604
        %812 = vmatpush.bf16.msra.mxu0 %v599
        %813 = vmatpush.bf16.msra.mxu0 %v594
        %814 = vmatpush.bf16.msra.mxu0 %v589
        %815 = vmatpush.bf16.msra.mxu0 %v584
        %816 = vmatmul.bf16.gmra.mxu0 %v437
        %v817 = vpop.f32.mrf.mxu0
        %v818 = vadd.f32 0.0, %v817
        %v819 = vpop.f32.mrf.mxu0
        %v820 = vadd.f32 0.0, %v819
        %821 = vmatmul.bf16.gmra.mxu0 %v438
        %v822 = vpop.f32.mrf.mxu0
        %v823 = vadd.f32 0.0, %v822
        %v824 = vpop.f32.mrf.mxu0
        %v825 = vadd.f32 0.0, %v824
        %826 = vmatmul.bf16.gmra.mxu0 %v439
        %v827 = vpop.f32.mrf.mxu0
        %v828 = vadd.f32 0.0, %v827
        %v829 = vpop.f32.mrf.mxu0
        %v830 = vadd.f32 0.0, %v829
        %831 = vmatmul.bf16.gmra.mxu0 %v440
        %v832 = vpop.f32.mrf.mxu0
        %v833 = vadd.f32 0.0, %v832
        %v834 = vpop.f32.mrf.mxu0
        %v835 = vadd.f32 0.0, %v834
        %836 = vmatmul.bf16.gmra.mxu0 %v441
        %v837 = vpop.f32.mrf.mxu0
        %v838 = vadd.f32 0.0, %v837
        %v839 = vpop.f32.mrf.mxu0
        %v840 = vadd.f32 0.0, %v839
        %841 = vmatmul.bf16.gmra.mxu0 %v442
        %v842 = vpop.f32.mrf.mxu0
        %v843 = vadd.f32 0.0, %v842
        %v844 = vpop.f32.mrf.mxu0
        %v845 = vadd.f32 0.0, %v844
        %846 = vmatmul.bf16.gmra.mxu0 %v443
        %v847 = vpop.f32.mrf.mxu0
        %v848 = vadd.f32 0.0, %v847
        %v849 = vpop.f32.mrf.mxu0
        %v850 = vadd.f32 0.0, %v849
        %851 = vmatmul.bf16.gmra.mxu0 %v444
        %v852 = vpop.f32.mrf.mxu0
        %v853 = vadd.f32 0.0, %v852
        %v854 = vpop.f32.mrf.mxu0
        %v855 = vadd.f32 0.0, %v854
        %856 = vdwg.mxu0
        %857 = vmatpush.bf16.msra.mxu0 %v620
        %858 = vmatpush.bf16.msra.mxu0 %v615
        %859 = vmatpush.bf16.msra.mxu0 %v610
        %860 = vmatpush.bf16.msra.mxu0 %v605
        %861 = vmatpush.bf16.msra.mxu0 %v600
        %862 = vmatpush.bf16.msra.mxu0 %v595
        %863 = vmatpush.bf16.msra.mxu0 %v590
        %864 = vmatpush.bf16.msra.mxu0 %v585
        %865 = vmatmul.bf16.gmra.mxu0 %v437
        %v866 = vpop.f32.mrf.mxu0
        %v867 = vadd.f32 0.0, %v866
        %v868 = vpop.f32.mrf.mxu0
        %v869 = vadd.f32 0.0, %v868
        %870 = vmatmul.bf16.gmra.mxu0 %v438
        %v871 = vpop.f32.mrf.mxu0
        %v872 = vadd.f32 0.0, %v871
        %v873 = vpop.f32.mrf.mxu0
        %v874 = vadd.f32 0.0, %v873
        %875 = vmatmul.bf16.gmra.mxu0 %v439
        %v876 = vpop.f32.mrf.mxu0
        %v877 = vadd.f32 0.0, %v876
        %v878 = vpop.f32.mrf.mxu0
        %v879 = vadd.f32 0.0, %v878
        %880 = vmatmul.bf16.gmra.mxu0 %v440
        %v881 = vpop.f32.mrf.mxu0
        %v882 = vadd.f32 0.0, %v881
        %v883 = vpop.f32.mrf.mxu0
        %v884 = vadd.f32 0.0, %v883
        %885 = vmatmul.bf16.gmra.mxu0 %v441
        %v886 = vpop.f32.mrf.mxu0
        %v887 = vadd.f32 0.0, %v886
        %v888 = vpop.f32.mrf.mxu0
        %v889 = vadd.f32 0.0, %v888
        %890 = vmatmul.bf16.gmra.mxu0 %v442
        %v891 = vpop.f32.mrf.mxu0
        %v892 = vadd.f32 0.0, %v891
        %v893 = vpop.f32.mrf.mxu0
        %v894 = vadd.f32 0.0, %v893
        %895 = vmatmul.bf16.gmra.mxu0 %v443
        %v896 = vpop.f32.mrf.mxu0
        %v897 = vadd.f32 0.0, %v896
        %v898 = vpop.f32.mrf.mxu0
        %v899 = vadd.f32 0.0, %v898
        %900 = vmatmul.bf16.gmra.mxu0 %v444
        %v901 = vpop.f32.mrf.mxu0
        %v902 = vadd.f32 0.0, %v901
        %v903 = vpop.f32.mrf.mxu0
        %v904 = vadd.f32 0.0, %v903
        %905 = vdwg.mxu0
        %v906 = vld [vmem:[%s339] sm:$0x1]
        %v908 = vperm.slane %v906, 0
        %v910 = vadd.f32 %v671, %v908
        %v911 = vadd.f32 %v673, %v908
        %v912 = vadd.f32 %v676, %v908
        %v913 = vadd.f32 %v678, %v908
        %v914 = vadd.f32 %v681, %v908
        %v915 = vadd.f32 %v683, %v908
        %v916 = vadd.f32 %v686, %v908
        %v917 = vadd.f32 %v688, %v908
        %v918 = vadd.f32 %v691, %v908
        %v919 = vadd.f32 %v693, %v908
        %v920 = vadd.f32 %v696, %v908
        %v921 = vadd.f32 %v698, %v908
        %v922 = vadd.f32 %v701, %v908
        %v923 = vadd.f32 %v703, %v908
        %v924 = vadd.f32 %v706, %v908
        %v925 = vadd.f32 %v708, %v908
        %v926 = vmul.f32 %v720, %v720
        %v927 = vmul.f32 %v722, %v722
        %v928 = vmul.f32 %v725, %v725
        %v929 = vmul.f32 %v727, %v727
        %v930 = vmul.f32 %v730, %v730
        %v931 = vmul.f32 %v732, %v732
        %v932 = vmul.f32 %v735, %v735
        %v933 = vmul.f32 %v737, %v737
        %v934 = vmul.f32 %v740, %v740
        %v935 = vmul.f32 %v742, %v742
        %v936 = vmul.f32 %v745, %v745
        %v937 = vmul.f32 %v747, %v747
        %v938 = vmul.f32 %v750, %v750
        %v939 = vmul.f32 %v752, %v752
        %v940 = vmul.f32 %v755, %v755
        %v941 = vmul.f32 %v757, %v757
        %v942 = vadd.f32 %v910, %v926
        %v943 = vadd.f32 %v911, %v927
        %v944 = vadd.f32 %v912, %v928
        %v945 = vadd.f32 %v913, %v929
        %v946 = vadd.f32 %v914, %v930
        %v947 = vadd.f32 %v915, %v931
        %v948 = vadd.f32 %v916, %v932
        %v949 = vadd.f32 %v917, %v933
        %v950 = vadd.f32 %v918, %v934
        %v951 = vadd.f32 %v919, %v935
        %v952 = vadd.f32 %v920, %v936
        %v953 = vadd.f32 %v921, %v937
        %v954 = vadd.f32 %v922, %v938
        %v955 = vadd.f32 %v923, %v939
        %v956 = vadd.f32 %v924, %v940
        %v957 = vadd.f32 %v925, %v941
        %v958 = vmul.f32 %v769, %v769
        %v959 = vmul.f32 %v771, %v771
        %v960 = vmul.f32 %v774, %v774
        %v961 = vmul.f32 %v776, %v776
        %v962 = vmul.f32 %v779, %v779
        %v963 = vmul.f32 %v781, %v781
        %v964 = vmul.f32 %v784, %v784
        %v965 = vmul.f32 %v786, %v786
        %v966 = vmul.f32 %v789, %v789
        %v967 = vmul.f32 %v791, %v791
        %v968 = vmul.f32 %v794, %v794
        %v969 = vmul.f32 %v796, %v796
        %v970 = vmul.f32 %v799, %v799
        %v971 = vmul.f32 %v801, %v801
        %v972 = vmul.f32 %v804, %v804
        %v973 = vmul.f32 %v806, %v806
        %v974 = vadd.f32 %v942, %v958
        %v975 = vadd.f32 %v943, %v959
        %v976 = vadd.f32 %v944, %v960
        %v977 = vadd.f32 %v945, %v961
        %v978 = vadd.f32 %v946, %v962
        %v979 = vadd.f32 %v947, %v963
        %v980 = vadd.f32 %v948, %v964
        %v981 = vadd.f32 %v949, %v965
        %v982 = vadd.f32 %v950, %v966
        %v983 = vadd.f32 %v951, %v967
        %v984 = vadd.f32 %v952, %v968
        %v985 = vadd.f32 %v953, %v969
        %v986 = vadd.f32 %v954, %v970
        %v987 = vadd.f32 %v955, %v971
        %v988 = vadd.f32 %v956, %v972
        %v989 = vadd.f32 %v957, %v973
        %v990 = vmul.f32 %v818, %v818
        %v991 = vmul.f32 %v820, %v820
        %v992 = vmul.f32 %v823, %v823
        %v993 = vmul.f32 %v825, %v825
        %v994 = vmul.f32 %v828, %v828
        %v995 = vmul.f32 %v830, %v830
        %v996 = vmul.f32 %v833, %v833
        %v997 = vmul.f32 %v835, %v835
        %v998 = vmul.f32 %v838, %v838
        %v999 = vmul.f32 %v840, %v840
        %v1000 = vmul.f32 %v843, %v843
        %v1001 = vmul.f32 %v845, %v845
        %v1002 = vmul.f32 %v848, %v848
        %v1003 = vmul.f32 %v850, %v850
        %v1004 = vmul.f32 %v853, %v853
        %v1005 = vmul.f32 %v855, %v855
        %v1006 = vadd.f32 %v974, %v990
        %v1007 = vadd.f32 %v975, %v991
        %v1008 = vadd.f32 %v976, %v992
        %v1009 = vadd.f32 %v977, %v993
        %v1010 = vadd.f32 %v978, %v994
        %v1011 = vadd.f32 %v979, %v995
        %v1012 = vadd.f32 %v980, %v996
        %v1013 = vadd.f32 %v981, %v997
        %v1014 = vadd.f32 %v982, %v998
        %v1015 = vadd.f32 %v983, %v999
        %v1016 = vadd.f32 %v984, %v1000
        %v1017 = vadd.f32 %v985, %v1001
        %v1018 = vadd.f32 %v986, %v1002
        %v1019 = vadd.f32 %v987, %v1003
        %v1020 = vadd.f32 %v988, %v1004
        %v1021 = vadd.f32 %v989, %v1005
        %v1022 = vmul.f32 %v867, %v867
        %v1023 = vmul.f32 %v869, %v869
        %v1024 = vmul.f32 %v872, %v872
        %v1025 = vmul.f32 %v874, %v874
        %v1026 = vmul.f32 %v877, %v877
        %v1027 = vmul.f32 %v879, %v879
        %v1028 = vmul.f32 %v882, %v882
        %v1029 = vmul.f32 %v884, %v884
        %v1030 = vmul.f32 %v887, %v887
        %v1031 = vmul.f32 %v889, %v889
        %v1032 = vmul.f32 %v892, %v892
        %v1033 = vmul.f32 %v894, %v894
        %v1034 = vmul.f32 %v897, %v897
        %v1035 = vmul.f32 %v899, %v899
        %v1036 = vmul.f32 %v902, %v902
        %v1037 = vmul.f32 %v904, %v904
        %v1038 = vadd.f32 %v1006, %v1022
        %v1039 = vadd.f32 %v1007, %v1023
        %v1040 = vadd.f32 %v1008, %v1024
        %v1041 = vadd.f32 %v1009, %v1025
        %v1042 = vadd.f32 %v1010, %v1026
        %v1043 = vadd.f32 %v1011, %v1027
        %v1044 = vadd.f32 %v1012, %v1028
        %v1045 = vadd.f32 %v1013, %v1029
        %v1046 = vadd.f32 %v1014, %v1030
        %v1047 = vadd.f32 %v1015, %v1031
        %v1048 = vadd.f32 %v1016, %v1032
        %v1049 = vadd.f32 %v1017, %v1033
        %v1050 = vadd.f32 %v1018, %v1034
        %v1051 = vadd.f32 %v1019, %v1035
        %v1052 = vadd.f32 %v1020, %v1036
        %v1053 = vadd.f32 %v1021, %v1037
        %1054 = vst [vmem:[%s329] sm:$0xff] %v1038
        %1055 = vst [vmem:[%s329 + $0x8] sm:$0xff] %v1039
        %1056 = vst [vmem:[%s329 + $0x10] sm:$0xff] %v1040
        %1057 = vst [vmem:[%s329 + $0x18] sm:$0xff] %v1041
        %1058 = vst [vmem:[%s329 + $0x20] sm:$0xff] %v1042
        %1059 = vst [vmem:[%s329 + $0x28] sm:$0xff] %v1043
        %1060 = vst [vmem:[%s329 + $0x30] sm:$0xff] %v1044
        %1061 = vst [vmem:[%s329 + $0x38] sm:$0xff] %v1045
        %1062 = vst [vmem:[%s329 + $0x40] sm:$0xff] %v1046
        %1063 = vst [vmem:[%s329 + $0x48] sm:$0xff] %v1047
        %1064 = vst [vmem:[%s329 + $0x50] sm:$0xff] %v1048
        %1065 = vst [vmem:[%s329 + $0x58] sm:$0xff] %v1049
        %1066 = vst [vmem:[%s329 + $0x60] sm:$0xff] %v1050
        %1067 = vst [vmem:[%s329 + $0x68] sm:$0xff] %v1051
        %1068 = vst [vmem:[%s329 + $0x70] sm:$0xff] %v1052
        %1069 = vst [vmem:[%s329 + $0x78] sm:$0xff] %v1053
        %s1070 = sand.u32 %s114, 1
        %s1071 = sand.u32 %s114, 1
        %s1072 = smul.addr %s1071, 128
        %s1073 = scalar_lea.vmem [#allocation3], %s1072
        // Predicated region
        $region59: #{convex_quadratic.1} parent=53 // pred_check
          %p1074 = pneg %p124
        $region60: #{convex_quadratic.1} parent=53 // pred_check_branch
          %1076 = sbr.rel (%p1074) target = $region62
        $region61: #{convex_quadratic.1} parent=53 // pred_region
          %s1077 = smul.u32 16, %s18
          %s1078 = smul.addr %s1077, 2
          %s1079 = sadd.s32 %s19, %s1078
          %s1080 = smul.addr %s1079, 8
          %s1081 = scalar_lea.vmem %s3, %s1080
          // Predicated region
          $region63: #{convex_quadratic.1} parent=61 // pred_check
            _
          $region64: #{convex_quadratic.1} parent=61 // pred_check_branch
            %1083 = sbr.rel (0) target = $region66
          $region65: #{convex_quadratic.1} parent=61 // pred_region
            // Predicated region
            $region67: #{convex_quadratic.1} parent=65 // pred_check
              _
            $region68: #{convex_quadratic.1} parent=65 // pred_check_branch
              %1085 = sbr.rel (0) target = $region70
            $region69: #{convex_quadratic.1} parent=65 // pred_region
              // Predicated region
              $region82: #{convex_quadratic.1} parent=69 // pred_check
                _
              $region83: #{convex_quadratic.1} parent=69 // pred_check_branch
                %1131 = sbr.rel (0) target = $region85
              $region84: #{convex_quadratic.1} parent=69 // pred_region
                loop: start=0, step=1, limit=1
                $region86: #{convex_quadratic.1} parent=84 // loop_pre_header
                  _
                $region87: #{convex_quadratic.1} parent=84 // loop_header
                  %s1133 = sphi 0, %s1137
                  %p1134 = scmp.ge.s32.totalorder %s1133, 1
                  %s1138 = sphi %s1073, %s1073
                  %s1139 = sphi %s1081, %s1081
                $region88: #{convex_quadratic.1} parent=84 // loop_header_branch
                  %1136 = sbr.rel (%p1134) target = $region92
                $region89: #{convex_quadratic.1} parent=84 // loop_body
                  %v1140 = vld [vmem:[%s1138] sm:$0xff]
                  %1141 = vst [vmem:[%s1139] sm:$0xff] %v1140
                  %v1142 = vld [vmem:[%s1138 + $0x8] sm:$0xff]
                  %1143 = vst [vmem:[%s1139 + $0x10] sm:$0xff] %v1142
                  %v1144 = vld [vmem:[%s1138 + $0x10] sm:$0xff]
                  %1145 = vst [vmem:[%s1139 + $0x20] sm:$0xff] %v1144
                  %v1146 = vld [vmem:[%s1138 + $0x18] sm:$0xff]
                  %1147 = vst [vmem:[%s1139 + $0x30] sm:$0xff] %v1146
                  %v1148 = vld [vmem:[%s1138 + $0x20] sm:$0xff]
                  %1149 = vst [vmem:[%s1139 + $0x40] sm:$0xff] %v1148
                  %v1150 = vld [vmem:[%s1138 + $0x28] sm:$0xff]
                  %1151 = vst [vmem:[%s1139 + $0x50] sm:$0xff] %v1150
                  %v1152 = vld [vmem:[%s1138 + $0x30] sm:$0xff]
                  %1153 = vst [vmem:[%s1139 + $0x60] sm:$0xff] %v1152
                  %v1154 = vld [vmem:[%s1138 + $0x38] sm:$0xff]
                  %1155 = vst [vmem:[%s1139 + $0x70] sm:$0xff] %v1154
                  %v1156 = vld [vmem:[%s1138 + $0x40] sm:$0xff]
                  %1157 = vst [vmem:[%s1139 + $0x80] sm:$0xff] %v1156
                  %v1158 = vld [vmem:[%s1138 + $0x48] sm:$0xff]
                  %1159 = vst [vmem:[%s1139 + $0x90] sm:$0xff] %v1158
                  %v1160 = vld [vmem:[%s1138 + $0x50] sm:$0xff]
                  %1161 = vst [vmem:[%s1139 + $0xa0] sm:$0xff] %v1160
                  %v1162 = vld [vmem:[%s1138 + $0x58] sm:$0xff]
                  %1163 = vst [vmem:[%s1139 + $0xb0] sm:$0xff] %v1162
                  %v1164 = vld [vmem:[%s1138 + $0x60] sm:$0xff]
                  %1165 = vst [vmem:[%s1139 + $0xc0] sm:$0xff] %v1164
                  %v1166 = vld [vmem:[%s1138 + $0x68] sm:$0xff]
                  %1167 = vst [vmem:[%s1139 + $0xd0] sm:$0xff] %v1166
                  %v1168 = vld [vmem:[%s1138 + $0x70] sm:$0xff]
                  %1169 = vst [vmem:[%s1139 + $0xe0] sm:$0xff] %v1168
                  %v1170 = vld [vmem:[%s1138 + $0x78] sm:$0xff]
                  %1171 = vst [vmem:[%s1139 + $0xf0] sm:$0xff] %v1170
                $region90: #{convex_quadratic.1} parent=84 // loop_footer
                  %s1137 = sadd.s32 1, %s1133
                $region91: #{convex_quadratic.1} parent=84 // loop_footer_branch
                  %1132 = sbr.rel target = $region87
                $region92: #{convex_quadratic.1} parent=84 // loop_exit
                  _
              $region85: #{convex_quadratic.1} parent=69 // pred_fallthru
                _
              // Predicated region
              $region93: #{convex_quadratic.1} parent=69 // pred_check
                _
              $region94: #{convex_quadratic.1} parent=69 // pred_check_branch
                %1173 = sbr.rel target = $region96
              $region95: #{convex_quadratic.1} parent=69 // pred_region
                _
              $region96: #{convex_quadratic.1} parent=69 // pred_fallthru
                _
            $region70: #{convex_quadratic.1} parent=65 // pred_fallthru
              _
            // Predicated region
            $region71: #{convex_quadratic.1} parent=65 // pred_check
              _
            $region72: #{convex_quadratic.1} parent=65 // pred_check_branch
              %1087 = sbr.rel target = $region74
            $region73: #{convex_quadratic.1} parent=65 // pred_region
              %s1089 = ssub.s32 256, 1
              loop: start=0, step=1, limit=1
              $region75: #{convex_quadratic.1} parent=73 // loop_pre_header
                _
              $region76: #{convex_quadratic.1} parent=73 // loop_header
                %s1091 = sphi 0, %s1095
                %p1092 = scmp.ge.s32.totalorder %s1091, 1
                %s1096 = sphi %s1073, %s1073
                %s1097 = sphi %s1081, %s1081
              $region77: #{convex_quadratic.1} parent=73 // loop_header_branch
                %1094 = sbr.rel (%p1092) target = $region81
              $region78: #{convex_quadratic.1} parent=73 // loop_body
                %v1098 = vld [vmem:[%s1096] sm:%s1089]
                %1099 = vst [vmem:[%s1097] sm:%s1089] %v1098
                %v1100 = vld [vmem:[%s1096 + $0x8] sm:%s1089]
                %1101 = vst [vmem:[%s1097 + $0x10] sm:%s1089] %v1100
                %v1102 = vld [vmem:[%s1096 + $0x10] sm:%s1089]
                %1103 = vst [vmem:[%s1097 + $0x20] sm:%s1089] %v1102
                %v1104 = vld [vmem:[%s1096 + $0x18] sm:%s1089]
                %1105 = vst [vmem:[%s1097 + $0x30] sm:%s1089] %v1104
                %v1106 = vld [vmem:[%s1096 + $0x20] sm:%s1089]
                %1107 = vst [vmem:[%s1097 + $0x40] sm:%s1089] %v1106
                %v1108 = vld [vmem:[%s1096 + $0x28] sm:%s1089]
                %1109 = vst [vmem:[%s1097 + $0x50] sm:%s1089] %v1108
                %v1110 = vld [vmem:[%s1096 + $0x30] sm:%s1089]
                %1111 = vst [vmem:[%s1097 + $0x60] sm:%s1089] %v1110
                %v1112 = vld [vmem:[%s1096 + $0x38] sm:%s1089]
                %1113 = vst [vmem:[%s1097 + $0x70] sm:%s1089] %v1112
                %v1114 = vld [vmem:[%s1096 + $0x40] sm:%s1089]
                %1115 = vst [vmem:[%s1097 + $0x80] sm:%s1089] %v1114
                %v1116 = vld [vmem:[%s1096 + $0x48] sm:%s1089]
                %1117 = vst [vmem:[%s1097 + $0x90] sm:%s1089] %v1116
                %v1118 = vld [vmem:[%s1096 + $0x50] sm:%s1089]
                %1119 = vst [vmem:[%s1097 + $0xa0] sm:%s1089] %v1118
                %v1120 = vld [vmem:[%s1096 + $0x58] sm:%s1089]
                %1121 = vst [vmem:[%s1097 + $0xb0] sm:%s1089] %v1120
                %v1122 = vld [vmem:[%s1096 + $0x60] sm:%s1089]
                %1123 = vst [vmem:[%s1097 + $0xc0] sm:%s1089] %v1122
                %v1124 = vld [vmem:[%s1096 + $0x68] sm:%s1089]
                %1125 = vst [vmem:[%s1097 + $0xd0] sm:%s1089] %v1124
                %v1126 = vld [vmem:[%s1096 + $0x70] sm:%s1089]
                %1127 = vst [vmem:[%s1097 + $0xe0] sm:%s1089] %v1126
                %v1128 = vld [vmem:[%s1096 + $0x78] sm:%s1089]
                %1129 = vst [vmem:[%s1097 + $0xf0] sm:%s1089] %v1128
              $region79: #{convex_quadratic.1} parent=73 // loop_footer
                %s1095 = sadd.s32 1, %s1091
              $region80: #{convex_quadratic.1} parent=73 // loop_footer_branch
                %1090 = sbr.rel target = $region76
              $region81: #{convex_quadratic.1} parent=73 // loop_exit
                _
            $region74: #{convex_quadratic.1} parent=65 // pred_fallthru
              _
          $region66: #{convex_quadratic.1} parent=61 // pred_fallthru
            _
          %1174 = vnop
        $region62: #{convex_quadratic.1} parent=53 // pred_fallthru
          _
      $region54: #{convex_quadratic.1} parent=5 // pred_fallthru
        _
      %p1175 = scmp.le.s32.totalorder 2, %s9
      // Predicated region
      $region97: #{convex_quadratic.1} parent=5 // pred_check
        %p1176 = pneg %p1175
      $region98: #{convex_quadratic.1} parent=5 // pred_check_branch
        %1178 = sbr.rel (%p1176) target = $region100
      $region99: #{convex_quadratic.1} parent=5 // pred_region
        %s1179 = ssub.s32 %s9, 2
        // Predicated region
        $region101: #{convex_quadratic.1} parent=99 // pred_check
          %p1180 = pneg %p130
        $region102: #{convex_quadratic.1} parent=99 // pred_check_branch
          %1182 = sbr.rel (%p1180) target = $region104
        $region103: #{convex_quadratic.1} parent=99 // pred_region
          %s1183 = sand.u32 %s115, 1
          %s1184 = sand.u32 %s115, 1
          %s1185 = smul.addr %s1184, 128
          %s1186 = scalar_lea.vmem [#allocation3], %s1185
        $region104: #{convex_quadratic.1} parent=99 // pred_fallthru
          _
      $region100: #{convex_quadratic.1} parent=5 // pred_fallthru
        _
    $region6: #{convex_quadratic.1} parent=1 // loop_footer
      %s13 = sadd.s32 1, %s9
    $region7: #{convex_quadratic.1} parent=1 // loop_footer_branch
      %8 = sbr.rel target = $region3
    $region8: #{convex_quadratic.1} parent=1 // loop_exit
      _

</llo_original>
